<compile_context>
chip_gen: v7x
topology: tpu7x:2x2x1
jax: 0.10.0
libtpu: 0.0.40
codegen_flags: <defaults>
</compile_context>

<pallas_src>
from functools import partial

import jax
import jax.numpy as jnp
from jax.experimental import pallas as pl
from jax.experimental.pallas import tpu as pltpu


def _round_up(v: int, m: int) -> int:
    return ((v + m - 1) // m) * m


def _tile_footprint_bytes(tile_n: int, d: int, c_pad: int) -> int:
    """Rough VMEM footprint of one pipelined grid step (f32, double buffers)."""
    f32 = 4
    x_buf = 2 * tile_n * d * f32            # x tile, double buffered
    ct_buf = 2 * d * c_pad * f32            # centers^T (loop invariant)
    cc_buf = 2 * 8 * c_pad * f32            # ||c||^2 row
    meta_buf = 2 * tile_n * 128 * f32       # [T, 2] block pads to a full lane tile
    out_buf = 8 * c_pad * f32               # resident accumulator
    return x_buf + ct_buf + cc_buf + meta_buf + out_buf


def _center_loss_kernel(x_ref, ct_ref, cc_ref, meta_ref, out_ref, *,
                        total_rows: int, tile_n: int):
    """One [TILE_N, D] row tile; accumulates a lane-dense partial into out_ref."""
    i = pl.program_id(0)  # reduction ("arbitrary") axis over row tiles

    @pl.when(i == 0)
    def _():
        out_ref[...] = jnp.zeros_like(out_ref)

    x = x_ref[...]                       # [T, D]   f32
    ct = ct_ref[...]                     # [D, Cp]  f32 (pre-transposed, class-padded)
    cc = cc_ref[...]                     # [1, Cp]  f32 (precomputed ||c||^2)
    labels_f = meta_ref[:, 0:1]          # [T, 1]   f32 (small ints, exact)
    m = meta_ref[:, 1:2]                 # [T, 1]   f32

    # ||x||^2 per row -> [T, 1]
    xx = jnp.sum(x * x, axis=1, keepdims=True)

    # x @ centers^T on the MXU, canonical [M,K]x[K,N] contraction.
    xc = jax.lax.dot_general(
        x, ct,
        dimension_numbers=(((1,), (0,)), ((), ())),
        preferred_element_type=jnp.float32,
    )                                    # [T, Cp]

    distmat = xx + cc - 2.0 * xc         # [T, Cp]

    # Row validity for the ragged tail: x is NOT padded in HBM, so OOB rows of
    # the last tile contain garbage and must be excluded with a select (not a
    # multiply, since 0*Inf = NaN).
    row_ids = i * tile_n + jax.lax.broadcasted_iota(jnp.int32, (tile_n, 1), 0)
    row_valid = row_ids < total_rows                                # [T, 1]

    class_ids = jax.lax.broadcasted_iota(jnp.int32, distmat.shape, 1)
    on_label = labels_f.astype(jnp.int32) == class_ids              # [T, Cp]

    # Off-label / padded-class / invalid-row entries are forced to exactly the
    # 1e-12 clip floor (subtracted analytically in the wrapper); the on-label
    # entry reproduces clamp(masks * distmat, 1e-12, 1e12) of the reference.
    dist = jnp.where(row_valid & on_label, m * distmat, 0.0)
    dist = jnp.clip(dist, 1e-12, 1.0e12)                            # [T, Cp]

    # Lane-dense accumulation: sublane (row) reduce only; the cross-lane reduce
    # happens once in the wrapper.
    out_ref[...] += jnp.sum(dist, axis=0, keepdims=True)            # [1, Cp]


def center_loss(outputs, padded_labels, masks, centers, *, max_tile_n: int = 1024):
    """outputs: [B, L, D] f32, padded_labels: [B, L] int, masks: [B, L] f32,
    centers: [C, D] f32. Returns the scalar f32 loss (matches the PyTorch module)."""
    b, l, d = outputs.shape
    n = b * l
    num_classes = centers.shape[0]

    # Lane-dense class dimension for distmat / MXU output.
    c_pad = _round_up(num_classes, 128)

    # Row tiling: as large as possible (amortize per-step overhead), multiple
    # of 8 sublanes, shrunk to fit a conservative VMEM buffer budget (safe for
    # v7x's 64 MiB physical / 32 MiB default scoped VMEM).
    tile_n = min(int(max_tile_n), _round_up(n, 8))
    tile_n = max(8, (tile_n // 8) * 8)
    vmem_budget = 24 << 20
    while tile_n > 8 and _tile_footprint_bytes(tile_n, d, c_pad) > vmem_budget:
        tile_n = max(8, ((tile_n // 2) // 8) * 8)

    num_tiles = pl.cdiv(n, tile_n)
    pad_tail = num_tiles * tile_n - n          # garbage rows of the last tile

    # No jnp.pad of x: pass the activations through untouched.
    x = outputs.reshape(n, d).astype(jnp.float32)

    # Merge the per-row scalars into a single [N, 2] side stream (one narrow
    # DMA per grid step instead of three). Labels are small ints, exact in f32.
    meta = jnp.stack(
        [padded_labels.reshape(n).astype(jnp.float32),
         masks.reshape(n).astype(jnp.float32)],
        axis=1)                                                     # [N, 2]

    # Pre-transposed, class-padded centers and hoisted ||c||^2.
    ct = centers.astype(jnp.float32).T                              # [D, C]
    if c_pad > num_classes:
        ct = jnp.pad(ct, ((0, 0), (0, c_pad - num_classes)))        # [D, Cp]
    cc = jnp.sum(ct * ct, axis=0, keepdims=True)                    # [1, Cp]

    vmem_limit = max(32 << 20, _tile_footprint_bytes(tile_n, d, c_pad) + (8 << 20))

    kernel = partial(_center_loss_kernel, total_rows=n, tile_n=tile_n)

    out_block = pl.pallas_call(
        kernel,
        out_shape=jax.ShapeDtypeStruct((1, c_pad), jnp.float32),
        grid=(num_tiles,),
        in_specs=[
            pl.BlockSpec((tile_n, d), lambda i: (i, 0)),    # x row tile (streamed)
            pl.BlockSpec((d, c_pad), lambda i: (0, 0)),     # centers^T (resident)
            pl.BlockSpec((1, c_pad), lambda i: (0, 0)),     # ||c||^2 (resident)
            pl.BlockSpec((tile_n, 2), lambda i: (i, 0)),    # labels+masks tile
        ],
        # Constant block index across the reduction axis -> resident accumulator.
        out_specs=pl.BlockSpec((1, c_pad), lambda i: (0, 0)),
        compiler_params=pltpu.CompilerParams(
            dimension_semantics=("arbitrary",),
            vmem_limit_bytes=vmem_limit,
        ),
    )(x, ct, cc, meta)

    # Single cross-lane reduce, once, in the wrapper.
    total = jnp.sum(out_block)

    # The kernel floors every off-label / padded-class / tail-row entry at
    # 1e-12; the reference only floors the (C-1) off-label real-class entries
    # of each of the n real rows. Correct analytically.
    floor_adjust = jnp.float32(
        n * (c_pad - num_classes) + pad_tail * c_pad) * jnp.float32(1e-12)
    return (total - floor_adjust) / jnp.float32(n)


def _reference(outputs, padded_labels, masks, centers):
    """Pure-JAX transcription of the PyTorch CenterLoss.forward."""
    b, l, d = outputs.shape
    n = b * l
    num_classes = centers.shape[0]
    x = outputs.reshape(n, d).astype(jnp.float32)
    labels = padded_labels.reshape(n).astype(jnp.int32)
    m = masks.reshape(n, 1).astype(jnp.float32)
    distmat = (
        jnp.sum(x * x, axis=1, keepdims=True)
        + jnp.sum(centers * centers, axis=1)[None, :]
        - 2.0 * x @ centers.T
    )
    distmat = distmat * m
    onehot = (labels[:, None] == jnp.arange(num_classes)[None, :]).astype(jnp.float32)
    dist = jnp.clip(distmat * onehot, 1e-12, 1.0e12)
    return jnp.sum(dist) / n


if __name__ == "__main__":
    # Small shapes consistent with the module: [batch, max_len, feat_dim];
    # num_classes follows the module default (37). max_len=9 makes N=18, which
    # is not a multiple of 8 -> exercises the in-kernel ragged-tail handling.
    batch, max_len, feat_dim, num_classes = 2, 9, 64, 37

    key = jax.random.PRNGKey(0)
    k1, k2, k3, k4 = jax.random.split(key, 4)

    outputs = jax.random.normal(k1, (batch, max_len, feat_dim), dtype=jnp.float32)
    padded_labels = jax.random.randint(k2, (batch, max_len), 0, num_classes,
                                       dtype=jnp.int32)
    # masks: 1.0 for valid positions, with some padding zeros.
    masks = (jax.random.uniform(k3, (batch, max_len)) > 0.25).astype(jnp.float32)
    # deterministic "centers" parameter (torch.randn(num_classes, feat_dim)).
    centers = jax.random.normal(k4, (num_classes, feat_dim), dtype=jnp.float32)

    ref = _reference(outputs, padded_labels, masks, centers)

    # Default tiling: one partial row tile (ragged tail path).
    loss = jax.block_until_ready(center_loss(outputs, padded_labels, masks, centers))
    assert jnp.allclose(loss, ref, rtol=1e-5, atol=1e-5), (loss, ref)

    # Forced tiny tiles: multi-step accumulation + partial last tile.
    loss_small = jax.block_until_ready(
        center_loss(outputs, padded_labels, masks, centers, max_tile_n=8))
    assert jnp.allclose(loss_small, ref, rtol=1e-5, atol=1e-5), (loss_small, ref)

    print("KERNEL_OK")
</pallas_src>

<mosaic_0001>
module attributes {stable_mosaic.version = 11 : i64} {
  func.func @_center_loss_kernel(%arg0: i32, %arg1: memref<24x64xf32, #tpu.memory_space<vmem>>, %arg2: memref<64x128xf32, #tpu.memory_space<vmem>>, %arg3: memref<1x128xf32, #tpu.memory_space<vmem>>, %arg4: memref<24x2xf32, #tpu.memory_space<vmem>>, %arg5: memref<1x128xf32, #tpu.memory_space<vmem>>) attributes {dimension_semantics = [#tpu.dimension_semantics<arbitrary>], iteration_bounds = array<i64: 1>, scalar_prefetch = 0 : i64, scratch_operands = 0 : i64, tpu.core_type = #tpu.core_type<tc>, window_params = [{transform_indices = @transform_0, window_bounds = array<i64: 24, 64>}, {pipeline_mode = #tpu.pipeline_mode<synchronous>, transform_indices = @transform_1, window_bounds = array<i64: 64, 128>}, {pipeline_mode = #tpu.pipeline_mode<synchronous>, transform_indices = @transform_2, window_bounds = array<i64: 1, 128>}, {transform_indices = @transform_3, window_bounds = array<i64: 24, 2>}, {pipeline_mode = #tpu.pipeline_mode<synchronous>, transform_indices = @transform_4, window_bounds = array<i64: 1, 128>}]} {
    %c0_i32 = arith.constant 0 : i32
    %0 = arith.cmpi eq, %arg0, %c0_i32 : i32
    %1 = arith.extui %0 : i1 to i32
    %c0_i32_0 = arith.constant 0 : i32
    %2 = arith.cmpi ne, %1, %c0_i32_0 : i32
    scf.if %2 {
      %cst_19 = arith.constant 0.000000e+00 : f32
      %43 = vector.broadcast %cst_19 : f32 to vector<1x128xf32>
      %c0_20 = arith.constant 0 : index
      %c0_21 = arith.constant 0 : index
      %44 = vector.load %arg5[%c0_20, %c0_21] : memref<1x128xf32, #tpu.memory_space<vmem>>, vector<1x128xf32>
      tpu.vector_store %arg5[%c0_20, %c0_21], %43 {strides = array<i32>} : memref<1x128xf32, #tpu.memory_space<vmem>>, vector<1x128xf32>,
    } else {
    }
    %c0 = arith.constant 0 : index
    %c0_1 = arith.constant 0 : index
    %3 = vector.load %arg1[%c0, %c0_1] : memref<24x64xf32, #tpu.memory_space<vmem>>, vector<24x64xf32>
    %c0_2 = arith.constant 0 : index
    %c0_3 = arith.constant 0 : index
    %4 = vector.load %arg2[%c0_2, %c0_3] : memref<64x128xf32, #tpu.memory_space<vmem>>, vector<64x128xf32>
    %c0_4 = arith.constant 0 : index
    %c0_5 = arith.constant 0 : index
    %5 = vector.load %arg3[%c0_4, %c0_5] : memref<1x128xf32, #tpu.memory_space<vmem>>, vector<1x128xf32>
    %c0_6 = arith.constant 0 : index
    %c0_7 = arith.constant 0 : index
    %6 = vector.load %arg4[%c0_6, %c0_7] : memref<24x2xf32, #tpu.memory_space<vmem>>, vector<24x1xf32>
    %c0_8 = arith.constant 0 : index
    %c1 = arith.constant 1 : index
    %7 = vector.load %arg4[%c0_8, %c1] : memref<24x2xf32, #tpu.memory_space<vmem>>, vector<24x1xf32>
    %8 = arith.mulf %3, %3 : vector<24x64xf32>
    %cst = arith.constant dense<0.000000e+00> : vector<24xf32>
    %9 = vector.multi_reduction <add>, %8, %cst [1] : vector<24x64xf32> to vector<24xf32>
    %10 = vector.shape_cast %9 : vector<24xf32> to vector<24x1xf32>
    %cst_9 = arith.constant dense<0.000000e+00> : vector<24x128xf32>
    %11 = tpu.matmul %3, %4, %cst_9 {dimension_numbers = #tpu.dot_dimension_numbers<[1], [0], [0], [1], [0, 0, 1, 1], [], []>} : vector<24x64xf32>, vector<64x128xf32>, vector<24x128xf32> -> vector<24x128xf32>
    %12 = vector.broadcast %10 : vector<24x1xf32> to vector<24x128xf32>
    %13 = vector.broadcast %5 : vector<1x128xf32> to vector<24x128xf32>
    %14 = arith.addf %12, %13 : vector<24x128xf32>
    %cst_10 = arith.constant 2.000000e+00 : f32
    %15 = vector.broadcast %cst_10 : f32 to vector<24x128xf32>
    %16 = arith.mulf %15, %11 : vector<24x128xf32>
    %17 = arith.subf %14, %16 : vector<24x128xf32>
    %c24_i32 = arith.constant 24 : i32
    %18 = arith.muli %arg0, %c24_i32 : i32
    %19 = tpu.iota {dimensions = array<i32: 0>} : vector<24x1xi32>
    %20 = vector.broadcast %18 : i32 to vector<24x1xi32>
    %21 = arith.addi %20, %19 : vector<24x1xi32>
    %c18_i32 = arith.constant 18 : i32
    %22 = vector.broadcast %c18_i32 : i32 to vector<24x1xi32>
    %23 = arith.cmpi slt, %21, %22 : vector<24x1xi32>
    %24 = tpu.iota {dimensions = array<i32: 1>} : vector<24x128xi32>
    %25 = arith.fptosi %6 : vector<24x1xf32> to vector<24x1xi32>
    %26 = vector.broadcast %25 : vector<24x1xi32> to vector<24x128xi32>
    %27 = arith.cmpi eq, %26, %24 : vector<24x128xi32>
    %28 = vector.broadcast %23 : vector<24x1xi1> to vector<24x128xi1>
    %29 = arith.andi %28, %27 : vector<24x128xi1>
    %30 = vector.broadcast %7 : vector<24x1xf32> to vector<24x128xf32>
    %31 = arith.mulf %30, %17 : vector<24x128xf32>
    %cst_11 = arith.constant 0.000000e+00 : f32
    %32 = vector.broadcast %cst_11 : f32 to vector<24x128xf32>
    %33 = arith.select %29, %31, %32 : vector<24x128xi1>, vector<24x128xf32>
    %cst_12 = arith.constant 9.99999996E-13 : f32
    %cst_13 = arith.constant 9.99999995E+11 : f32
    %34 = vector.broadcast %cst_12 : f32 to vector<24x128xf32>
    %35 = arith.maximumf %34, %33 : vector<24x128xf32>
    %36 = vector.broadcast %cst_13 : f32 to vector<24x128xf32>
    %37 = arith.minimumf %36, %35 : vector<24x128xf32>
    %c0_14 = arith.constant 0 : index
    %c0_15 = arith.constant 0 : index
    %38 = vector.load %arg5[%c0_14, %c0_15] : memref<1x128xf32, #tpu.memory_space<vmem>>, vector<1x128xf32>
    %cst_16 = arith.constant dense<0.000000e+00> : vector<128xf32>
    %39 = vector.multi_reduction <add>, %37, %cst_16 [0] : vector<24x128xf32> to vector<128xf32>
    %40 = vector.shape_cast %39 : vector<128xf32> to vector<1x128xf32>
    %41 = arith.addf %38, %40 : vector<1x128xf32>
    %c0_17 = arith.constant 0 : index
    %c0_18 = arith.constant 0 : index
    %42 = vector.load %arg5[%c0_17, %c0_18] : memref<1x128xf32, #tpu.memory_space<vmem>>, vector<1x128xf32>
    tpu.vector_store %arg5[%c0_17, %c0_18], %41 {strides = array<i32>} : memref<1x128xf32, #tpu.memory_space<vmem>>, vector<1x128xf32>,
    return
  }
  func.func @transform_0(%arg0: i32) -> (i32, i32) {
    %c0_i32 = arith.constant 0 : i32
    %c0_i32_0 = arith.constant 0 : i32
    return %arg0, %c0_i32 : i32, i32
  }
  func.func @transform_1(%arg0: i32) -> (i32, i32) {
    %c0_i32 = arith.constant 0 : i32
    %c0_i32_0 = arith.constant 0 : i32
    %c0_i32_1 = arith.constant 0 : i32
    return %c0_i32, %c0_i32_0 : i32, i32
  }
  func.func @transform_2(%arg0: i32) -> (i32, i32) {
    %c0_i32 = arith.constant 0 : i32
    %c0_i32_0 = arith.constant 0 : i32
    %c0_i32_1 = arith.constant 0 : i32
    return %c0_i32, %c0_i32_0 : i32, i32
  }
  func.func @transform_3(%arg0: i32) -> (i32, i32) {
    %c0_i32 = arith.constant 0 : i32
    %c0_i32_0 = arith.constant 0 : i32
    return %arg0, %c0_i32 : i32, i32
  }
  func.func @transform_4(%arg0: i32) -> (i32, i32) {
    %c0_i32 = arith.constant 0 : i32
    %c0_i32_0 = arith.constant 0 : i32
    %c0_i32_1 = arith.constant 0 : i32
    return %c0_i32, %c0_i32_0 : i32, i32
  }
}

</mosaic_0001>

<llo_original>
// kernel: tpu_custom_call.1
$region0: #{tpu_custom_call.1}
  #allocation0 [shape = 'u32[]', space=smem, size = 0x4, offset = 0x4, fixed_abs, tag = 'smem constant byte address 0x4 - core index']
  #allocation1 [shape = 'u32[144,128]{1,0:T(1,128)}', space=vmem, size = 0x12000, scoped, tag = 'internal scratch']
  %s0 = inlined_call_operand.vmem [shape: f32[18,64], index: 0, kind: input, shape index: {}]
  %s1 = inlined_call_operand.hbm [shape: f32[64,128], index: 1, kind: input, shape index: {}]
  %s2 = inlined_call_operand.vmem [shape: f32[1,128], index: 2, kind: input, shape index: {}]
  %s3 = inlined_call_operand.vmem [shape: f32[18,2], index: 3, kind: input, shape index: {}]
  %s4 = inlined_call_operand.hbm [shape: f32[1,128], index: 4, kind: output, shape index: {}]
  %s5 = sld [smem:[#allocation0]]
  $region34: #{tpu_custom_call.1} parent=0
    _
  %s7 = ssub.s32 1, %s5
  %s8 = scalar_select 0, %s7, %s5
  $region1: #{tpu_custom_call.1} parent=0
    #allocation2 [shape = 'u8[32768]{0}', space=vmem, size = 0x8000, scoped, tag = 'input window, operand 1, single buffered']
    #allocation3 [shape = 's32[1]{0}', space=sflag, size = 0x4, scoped, tag = 'scoped memory for tpu_custom_call.1']
    #allocation4 [shape = 's32[1]{0}', space=sflag, size = 0x4, scoped, tag = 'scoped memory for tpu_custom_call.1']
    #allocation5 [shape = 'u8[512]{0}', space=vmem, size = 0x400, scoped, tag = 'output window, operand 0, single buffered']
    %9 = vsyncpa [#allocation3], 0
    %10 = vsyncpa [#allocation4], 0
    // Predicated region
    $region2: #{tpu_custom_call.1} parent=1 // pred_check
      _
    $region3: #{tpu_custom_call.1} parent=1 // pred_check_branch
      %12 = sbr.rel (0) target = $region5
    $region4: #{tpu_custom_call.1} parent=1 // pred_region
      _
    $region5: #{tpu_custom_call.1} parent=1 // pred_fallthru
      _
    // Predicated region
    $region6: #{tpu_custom_call.1} parent=1 // pred_check
      _
    $region7: #{tpu_custom_call.1} parent=1 // pred_check_branch
      %14 = sbr.rel (0) target = $region9
    $region8: #{tpu_custom_call.1} parent=1 // pred_region
      %s16 = ssub.s32 1024, 1024
      %17 = vsyncadd [#allocation3], %s16
      %s18 = sshll.u32 [#allocation2], 4
      %s19 = int_to_ptr.vmem [resolvable:$true] %s18
      %24 = dma.hbm_to_vmem [thread:$0]  %s1, 1024, %s19, [#allocation3], 128, 128, 8
    $region9: #{tpu_custom_call.1} parent=1 // pred_fallthru
      _
    // Predicated region
    $region10: #{tpu_custom_call.1} parent=1 // pred_check
      _
    $region11: #{tpu_custom_call.1} parent=1 // pred_check_branch
      %26 = sbr.rel (0) target = $region13
    $region12: #{tpu_custom_call.1} parent=1 // pred_region
      _
    $region13: #{tpu_custom_call.1} parent=1 // pred_fallthru
      _
    // Predicated region
    $region14: #{tpu_custom_call.1} parent=1 // pred_check
      _
    $region15: #{tpu_custom_call.1} parent=1 // pred_check_branch
      %28 = sbr.rel (0) target = $region17
    $region16: #{tpu_custom_call.1} parent=1 // pred_region
      _
    $region17: #{tpu_custom_call.1} parent=1 // pred_fallthru
      _
    // Predicated region
    $region18: #{tpu_custom_call.1} parent=1 // pred_check
      _
    $region19: #{tpu_custom_call.1} parent=1 // pred_check_branch
      %30 = sbr.rel (0) target = $region21
    $region20: #{tpu_custom_call.1} parent=1 // pred_region
      %31 = dma.done [#allocation3], 1024
    $region21: #{tpu_custom_call.1} parent=1 // pred_fallthru
      _
    %p32 = scmp.eq.s32.totalorder 0, 0
    // Predicated region
    $region22: #{tpu_custom_call.1} parent=1 // pred_check
      %p33 = pneg %p32
    $region23: #{tpu_custom_call.1} parent=1 // pred_check_branch
      %35 = sbr.rel (%p33) target = $region25
    $region24: #{tpu_custom_call.1} parent=1 // pred_region
      %36 = vst [vmem:[#allocation5] sm:$0x1] 0.0
    $region25: #{tpu_custom_call.1} parent=1 // pred_fallthru
      _
    %v37 = vld [vmem:[%s0] sm:$0xff]
    %v38 = vld [vmem:[%s0 + $0x8] sm:$0xff]
    %v39 = vld [vmem:[%s0 + $0x10] sm:$0xff]
    %v40 = vld [vmem:[#allocation2] sm:$0xff]
    %v41 = vld [vmem:[#allocation2 + $0x8] sm:$0xff]
    %v42 = vld [vmem:[#allocation2 + $0x10] sm:$0xff]
    %v43 = vld [vmem:[#allocation2 + $0x18] sm:$0xff]
    %v44 = vld [vmem:[#allocation2 + $0x20] sm:$0xff]
    %v45 = vld [vmem:[#allocation2 + $0x28] sm:$0xff]
    %v46 = vld [vmem:[#allocation2 + $0x30] sm:$0xff]
    %v47 = vld [vmem:[#allocation2 + $0x38] sm:$0xff]
    %v48 = vld [vmem:[%s2] sm:$0x1]
    %v49 = vld [vmem:[%s3] sm:$0xff]
    %v50 = vld [vmem:[%s3 + $0x8] sm:$0xff]
    %v51 = vld [vmem:[%s3 + $0x10] sm:$0xff]
    %v52 = vmul.f32 %v37, %v37
    %v53 = vmul.f32 %v38, %v38
    %v54 = vmul.f32 %v39, %v39
    %vm55 = vcmask 523264
    %v56 = vsel %vm55, %v52, 0.0
    %57 = vadd.xlane.f32.xlu0 %v56
    %v58 = vpop.xlane.xlu0 %57
    %v59 = vsel %vm55, %v53, 0.0
    %60 = vadd.xlane.f32.xlu0 %v59
    %v61 = vpop.xlane.xlu0 %60
    %v62 = vsel %vm55, %v54, 0.0
    %63 = vadd.xlane.f32.xlu0 %v62
    %v64 = vpop.xlane.xlu0 %63
    %v66 = vsel %vm55, %v37, 0
    %v69 = vsel %vm55, %v38, 0
    %v72 = vsel %vm55, %v39, 0
    %74 = vmatprep.subr.mxu0 0.0
    %75 = vmatpush1.msra.mxu0 %v40
    %76 = vmatprep.subr.mxu0 0.0
    %77 = vmatpush1.msra.mxu0 %v41
    %78 = vmatprep.subr.mxu0 0.0
    %79 = vmatpush1.msra.mxu0 %v42
    %80 = vmatprep.subr.mxu0 0.0
    %81 = vmatpush1.msra.mxu0 %v43
    %82 = vmatprep.subr.mxu0 0.0
    %83 = vmatpush1.msra.mxu0 %v44
    %84 = vmatprep.subr.mxu0 0.0
    %85 = vmatpush1.msra.mxu0 %v45
    %86 = vmatprep.subr.mxu0 0.0
    %87 = vmatpush1.msra.mxu0 %v46
    %88 = vmatprep.subr.mxu0 0.0
    %89 = vmatpush1.msra.mxu0 %v47
    %90 = vmatprep.subr.mxu0 0.0
    %91 = vmatpush1.msra.mxu0 0.0
    %92 = vmatprep.subr.mxu0 0.0
    %93 = vmatpush1.msra.mxu0 0.0
    %94 = vmatprep.subr.mxu0 0.0
    %95 = vmatpush1.msra.mxu0 0.0
    %96 = vmatprep.subr.mxu0 0.0
    %97 = vmatpush1.msra.mxu0 0.0
    %98 = vmatprep.subr.mxu0 0.0
    %99 = vmatpush1.msra.mxu0 0.0
    %100 = vmatprep.subr.mxu0 0.0
    %101 = vmatpush1.msra.mxu0 0.0
    %102 = vmatprep.subr.mxu0 0.0
    %103 = vmatpush1.msra.mxu0 0.0
    %104 = vmatprep.subr.mxu0 0.0
    %105 = vmatpush1.msra.mxu0 0.0
    %106 = vmatprep.subr.mxu0 0.0
    %107 = vmatpush1.msra.mxu0 0.0
    %108 = vmatprep.subr.mxu0 0.0
    %109 = vmatpush1.msra.mxu0 0.0
    %110 = vmatprep.subr.mxu0 0.0
    %111 = vmatpush1.msra.mxu0 0.0
    %112 = vmatprep.subr.mxu0 0.0
    %113 = vmatpush1.msra.mxu0 0.0
    %114 = vmatprep.subr.mxu0 0.0
    %115 = vmatpush1.msra.mxu0 0.0
    %116 = vmatprep.subr.mxu0 0.0
    %117 = vmatpush1.msra.mxu0 0.0
    %118 = vmatprep.subr.mxu0 0.0
    %119 = vmatpush1.msra.mxu0 0.0
    %120 = vmatprep.subr.mxu0 0.0
    %121 = vmatpush1.msra.mxu0 0.0
    %122 = vmatprep.subr.mxu0 0.0
    %123 = vmatpush1.msra.mxu0 0.0
    %124 = vmatprep.subr.mxu0 0.0
    %125 = vmatpush1.msra.mxu0 0.0
    %126 = vmatprep.subr.mxu0 0.0
    %127 = vmatpush1.msra.mxu0 0.0
    %128 = vmatprep.subr.mxu0 0.0
    %129 = vmatpush1.msra.mxu0 0.0
    %130 = vmatprep.subr.mxu0 0.0
    %131 = vmatpush1.msra.mxu0 0.0
    %132 = vmatprep.subr.mxu0 0.0
    %133 = vmatpush1.msra.mxu0 0.0
    %134 = vmatprep.subr.mxu0 0.0
    %135 = vmatpush1.msra.mxu0 0.0
    %136 = vmatprep.subr.mxu0 0.0
    %137 = vmatpush1.msra.mxu0 0.0
    %138 = vmatprep.mubr.f32.mxu0 0.0
    %139 = vmatmul.mubr.f32.gmra.mrb[0].mxu0 %v66
    %v140 = vpop.f32.mrb[0].mxu0
    %v141 = vadd.f32 0.0, %v140
    %v142 = vpop.f32.mrb[0].mxu0
    %143 = vmatprep.mubr.f32.mxu0 0.0
    %144 = vmatmul.mubr.f32.gmra.mrb[0].mxu0 %v69
    %v145 = vpop.f32.mrb[0].mxu0
    %v146 = vadd.f32 0.0, %v145
    %v147 = vpop.f32.mrb[0].mxu0
    %148 = vmatprep.mubr.f32.mxu0 0.0
    %149 = vmatmul.mubr.f32.gmra.mrb[0].mxu0 %v72
    %v150 = vpop.f32.mrb[0].mxu0
    %v151 = vadd.f32 0.0, %v150
    %v152 = vpop.f32.mrb[0].mxu0
    %153 = vdwg.mxu0
    %v155 = vlaneseq
    %v156 = vshrl.u32 %v155, 7
    %v157 = vsub.s32 0, %v156
    %v158 = vrot.slane %v48, %v157
    %v160 = vadd.f32 %v58, %v158
    %v161 = vadd.f32 %v61, %v158
    %v162 = vadd.f32 %v64, %v158
    %v163 = vmul.f32 %v141, 2.0
    %v164 = vmul.f32 %v146, 2.0
    %v165 = vmul.f32 %v151, 2.0
    %v166 = vsub.f32 %v160, %v163
    %v167 = vsub.f32 %v161, %v164
    %v168 = vsub.f32 %v162, %v165
    %s169 = smul.u32 0, 24
    %v170 = vlaneseq
    %v171 = vshrl.u32 %v170, 7
    %v172 = vadd.s32 %v171, 8
    %v173 = vadd.s32 %v171, 16
    %v174 = vstv %s169
    %v175 = vadd.s32 %v174, %v171
    %v176 = vadd.s32 %v174, %v172
    %v177 = vadd.s32 %v174, %v173
    %vm178 = vcmp.lt.s32.totalorder %v175, 18
    %vm179 = vcmp.lt.s32.totalorder %v176, 18
    %vm180 = vcmp.lt.s32.totalorder %v177, 18
    %v181 = vlaneseq
    %v182 = vand.u32 %v181, 127
    %v183 = vcvt.f32.s32.to.zero.pseudo %v49
    %v184 = vcvt.f32.s32.to.zero.pseudo %v50
    %v185 = vcvt.f32.s32.to.zero.pseudo %v51
    %186 = vset.pattern.permute.xlu0 0
    %187 = vperm.xlu0 %186, %v183
    %v188 = vpop.permute.xlu0 %187
    %189 = vset.pattern.permute.xlu0 0
    %190 = vperm.xlu0 %189, %v184
    %v191 = vpop.permute.xlu0 %190
    %192 = vset.pattern.permute.xlu0 0
    %193 = vperm.xlu0 %192, %v185
    %v194 = vpop.permute.xlu0 %193
    %vm195 = vcmp.eq.s32.totalorder %v188, %v182
    %vm196 = vcmp.eq.s32.totalorder %v191, %v182
    %vm197 = vcmp.eq.s32.totalorder %v194, %v182
    %v198 = vsel %vm178, 1, 0
    %v199 = vsel %vm179, 1, 0
    %v200 = vsel %vm180, 1, 0
    %vm201 = vcmp.eq.s32.totalorder %v198, 1
    %vm202 = vcmp.eq.s32.totalorder %v199, 1
    %vm203 = vcmp.eq.s32.totalorder %v200, 1
    %vm204 = vmand %vm201, %vm195
    %vm205 = vmand %vm202, %vm196
    %vm206 = vmand %vm203, %vm197
    %208 = vset.pattern.permute.xlu0 1
    %209 = vperm.xlu0 %208, %v49
    %v210 = vpop.permute.xlu0 %209
    %213 = vset.pattern.permute.xlu0 1
    %214 = vperm.xlu0 %213, %v50
    %v215 = vpop.permute.xlu0 %214
    %218 = vset.pattern.permute.xlu0 1
    %219 = vperm.xlu0 %218, %v51
    %v220 = vpop.permute.xlu0 %219
    %v222 = vmul.f32 %v210, %v166
    %v223 = vmul.f32 %v215, %v167
    %v224 = vmul.f32 %v220, %v168
    %v225 = vsel %vm204, %v222, 0.0
    %v226 = vsel %vm205, %v223, 0.0
    %v227 = vsel %vm206, %v224, 0.0
    %v228 = vmax.f32 %v225, 1e-12
    %v229 = vmax.f32 %v226, 1e-12
    %v230 = vmax.f32 %v227, 1e-12
    %v231 = vmin.f32 %v228, 1e+12
    %v232 = vmin.f32 %v229, 1e+12
    %v233 = vmin.f32 %v230, 1e+12
    %v234 = vld [vmem:[#allocation5] sm:$0x1]
    %v235 = vadd.f32 %v231, %v232
    %v236 = vadd.f32 %v235, %v233
    %v237 = vrot.slane %v236, 4
    %v238 = vadd.f32 %v236, %v237
    %v239 = vrot.slane %v238, 2
    %v240 = vadd.f32 %v238, %v239
    %v241 = vrot.slane %v240, 1
    %v242 = vadd.f32 %v240, %v241
    %v243 = vadd.f32 %v234, %v242
    %244 = vst [vmem:[#allocation5] sm:$0x1] %v243
    // Predicated region
    $region26: #{tpu_custom_call.1} parent=1 // pred_check
      _
    $region27: #{tpu_custom_call.1} parent=1 // pred_check_branch
      %246 = sbr.rel (0) target = $region29
    $region28: #{tpu_custom_call.1} parent=1 // pred_region
      %s248 = ssub.s32 16, 16
      %249 = vsyncadd [#allocation4], %s248
      %s251 = sshll.u32 [#allocation5], 4
      %s252 = int_to_ptr.vmem [resolvable:$true] %s251
      %254 = dma.vmem_to_hbm [thread:$0]  %s252, 16, %s4, [#allocation4]
    $region29: #{tpu_custom_call.1} parent=1 // pred_fallthru
      _
    // Predicated region
    $region30: #{tpu_custom_call.1} parent=1 // pred_check
      _
    $region31: #{tpu_custom_call.1} parent=1 // pred_check_branch
      %256 = sbr.rel (0) target = $region33
    $region32: #{tpu_custom_call.1} parent=1 // pred_region
      %257 = dma.done [#allocation4], 16
    $region33: #{tpu_custom_call.1} parent=1 // pred_fallthru
      _
    %258 = vsyncpa [#allocation3], 1
    %259 = vsyncpa [#allocation4], 1

</llo_original>
